<compile_context>
chip_gen: v7x
topology: tpu7x:2x2x1
jax: 0.10.0
libtpu: 0.0.40
codegen_flags: <defaults>
</compile_context>

<pallas_src>
import numpy as np
import jax
import jax.numpy as jnp
from jax.experimental import pallas as pl
from jax.experimental.pallas import tpu as pltpu


def _ceil_to(v, m):
    return ((v + m - 1) // m) * m


# ------------------------------ Pallas kernels ------------------------------

def _conv_bn_relu_kernel(g_ref, scale_ref, shift_ref, w_ref, o_ref):
    """out_tile = relu(g_tile * scale + shift) @ W   (BN+ReLU fused into conv prologue)."""
    x = g_ref[...].astype(jnp.float32) * scale_ref[...] + shift_ref[...]
    x = jnp.maximum(x, 0.0).astype(jnp.bfloat16)
    o_ref[...] = jnp.dot(x, w_ref[...],
                         preferred_element_type=jnp.float32).astype(o_ref.dtype)


def _conv_bn_relu_res_kernel(g_ref, scale_ref, shift_ref, w_ref, id_ref, o_ref):
    """Same as above + residual identity add fused into the epilogue."""
    x = g_ref[...].astype(jnp.float32) * scale_ref[...] + shift_ref[...]
    x = jnp.maximum(x, 0.0).astype(jnp.bfloat16)
    acc = jnp.dot(x, w_ref[...], preferred_element_type=jnp.float32)
    o_ref[...] = (acc + id_ref[...].astype(jnp.float32)).astype(o_ref.dtype)


def _linear_kernel(x_ref, w_ref, o_ref):
    """SubMConv3d kernel_size=1 bias=False (ResidualBlock i_branch): y = x @ W."""
    o_ref[...] = jnp.dot(x_ref[...], w_ref[...],
                         preferred_element_type=jnp.float32).astype(o_ref.dtype)


# ------------------------------ Pallas wrappers ------------------------------

def bn_relu_sparse_conv(features, neighbor_idx, w_flat, identity=None, *,
                        eps=1e-4, tn_max=512):
    """norm_fn (BatchNorm1d batch stats, weight=1, bias=0, eps=1e-4) -> ReLU -> sparse conv,
    optionally + residual identity.

    features:     (N_in, C_in)  bf16 active-voxel features
    neighbor_idx: (N_out, K)    int32 rulebook, -1 == missing neighbor
    w_flat:       (K*C_in, C_out) bf16 conv weight, K-major flattening
    identity:     optional (N_out, C_out) residual added to the conv output
    """
    n_in, c_in = features.shape
    idx = jnp.asarray(neighbor_idx, jnp.int32)
    n_out, K = idx.shape
    kc, c_out = w_flat.shape
    assert kc == K * c_in

    # Training-mode batch statistics in fp32 (two-pass mean/variance, no E[x^2]-mean^2 cancellation).
    xf = features.astype(jnp.float32)
    mean = jnp.mean(xf, axis=0)
    var = jnp.mean(jnp.square(xf - mean), axis=0)
    # bf16-rounded mean is used both as the gather fill value and in the shift, so that missing
    # neighbors map to exactly 0 after BN+ReLU inside the kernel.
    mean_b = mean.astype(jnp.bfloat16).astype(jnp.float32)
    scale_c = jax.lax.rsqrt(var + eps)          # gamma = 1
    shift_c = -mean_b * scale_c                 # beta  = 0

    # Rulebook gather (XLA) directly into the lane-dense (N_out, K*C_in) bf16 contraction layout
    # (no transpose, no extra zero-pad pass over the big slab).
    # TODO(synk): move this gather inside the Pallas kernel (scalar-prefetch / DMA gather) to avoid
    # materializing the K*C_in slab in HBM at very large voxel counts.
    g = jnp.take(features, jnp.maximum(idx, 0), axis=0)                     # (N_out, K, C_in)
    g = jnp.where((idx >= 0)[..., None], g, mean_b.astype(features.dtype))  # fill -> BN+ReLU -> 0
    g = g.reshape(n_out, kc)

    scale = jnp.tile(scale_c, K).reshape(1, kc)
    shift = jnp.tile(shift_c, K).reshape(1, kc)

    tn = min(tn_max, _ceil_to(n_out, 16))       # bf16 sublane packing -> multiple of 16 rows
    grid = (pl.cdiv(n_out, tn),)

    in_specs = [
        pl.BlockSpec((tn, kc), lambda i: (i, 0)),        # gathered slab tile
        pl.BlockSpec((1, kc), lambda i: (0, 0)),         # BN scale (fp32)
        pl.BlockSpec((1, kc), lambda i: (0, 0)),         # BN shift (fp32)
        pl.BlockSpec((kc, c_out), lambda i: (0, 0)),     # flattened conv weight
    ]
    args = [g, scale, shift, w_flat]
    if identity is not None:
        in_specs.append(pl.BlockSpec((tn, c_out), lambda i: (i, 0)))
        args.append(identity.astype(jnp.bfloat16))
        kernel = _conv_bn_relu_res_kernel
    else:
        kernel = _conv_bn_relu_kernel

    cost = pl.CostEstimate(
        flops=2 * n_out * kc * c_out + 3 * n_out * kc,
        transcendentals=0,
        bytes_accessed=(n_out * kc + kc * c_out + n_out * c_out) * 2 + 2 * kc * 4)

    out = pl.pallas_call(
        kernel,
        out_shape=jax.ShapeDtypeStruct((n_out, c_out), jnp.bfloat16),
        grid=grid,
        in_specs=in_specs,
        out_specs=pl.BlockSpec((tn, c_out), lambda i: (i, 0)),
        compiler_params=pltpu.CompilerParams(dimension_semantics=("parallel",)),
        cost_estimate=cost,
    )(*args)
    return out


def linear_nobias(x, w, *, tn_max=512):
    """SubMConv3d kernel_size=1, bias=False (i_branch): y = x @ W, N-tiled, bf16 MXU / fp32 acc."""
    n, c_in = x.shape
    c_out = w.shape[1]
    tn = min(tn_max, _ceil_to(n, 16))
    return pl.pallas_call(
        _linear_kernel,
        out_shape=jax.ShapeDtypeStruct((n, c_out), jnp.bfloat16),
        grid=(pl.cdiv(n, tn),),
        in_specs=[pl.BlockSpec((tn, c_in), lambda i: (i, 0)),
                  pl.BlockSpec((c_in, c_out), lambda i: (0, 0))],
        out_specs=pl.BlockSpec((tn, c_out), lambda i: (i, 0)),
        compiler_params=pltpu.CompilerParams(dimension_semantics=("parallel",)),
    )(x, w)


# --------------------- host-side rulebook construction (glue) ---------------------
# Equivalent of spconv's indice/rulebook generation; indice_key sharing == table reuse per level.

def build_subm_neighbors(coords):
    """SubMConv3d k=3 pad=1: output sites == input sites; 27-offset neighbor table."""
    n = coords.shape[0]
    cmap = {tuple(c): i for i, c in enumerate(coords.tolist())}
    offs = [(dx, dy, dz) for dx in (-1, 0, 1) for dy in (-1, 0, 1) for dz in (-1, 0, 1)]
    idx = np.full((n, len(offs)), -1, np.int32)
    for i, (b, x, y, z) in enumerate(coords.tolist()):
        for k, (dx, dy, dz) in enumerate(offs):
            j = cmap.get((b, x + dx, y + dy, z + dz))
            if j is not None:
                idx[i, k] = j
    return idx


def build_downsample(coords):
    """SparseConv3d k=2 s=2 (down_idx) and its SparseInverseConv3d (up_idx), shared indice_key."""
    cmap = {tuple(c): i for i, c in enumerate(coords.tolist())}
    down_map, down_coords = {}, []
    for (b, x, y, z) in coords.tolist():
        key = (b, x // 2, y // 2, z // 2)
        if key not in down_map:
            down_map[key] = len(down_coords)
            down_coords.append(key)
    offs = [(dx, dy, dz) for dx in (0, 1) for dy in (0, 1) for dz in (0, 1)]
    down_idx = np.full((len(down_coords), 8), -1, np.int32)
    for o, (b, x, y, z) in enumerate(down_coords):
        for k, (dx, dy, dz) in enumerate(offs):
            j = cmap.get((b, 2 * x + dx, 2 * y + dy, 2 * z + dz))
            if j is not None:
                down_idx[o, k] = j
    up_idx = np.full((coords.shape[0], 8), -1, np.int32)
    for i, (b, x, y, z) in enumerate(coords.tolist()):
        o = down_map[(b, x // 2, y // 2, z // 2)]
        k = (x % 2) * 4 + (y % 2) * 2 + (z % 2)
        up_idx[i, k] = o
    return np.array(down_coords, np.int32), down_idx, up_idx


def build_levels(coords, depth):
    levels, cur = [], coords
    for d in range(depth):
        ld = {'subm_idx': build_subm_neighbors(cur)}
        if d < depth - 1:
            down_coords, down_idx, up_idx = build_downsample(cur)
            ld['down_idx'] = down_idx
            ld['up_idx'] = up_idx
            cur = down_coords
        levels.append(ld)
    for d in range(depth - 1):
        levels[d]['child'] = levels[d + 1]
    return levels[0]


# ------------------------------ parameters ------------------------------
# Conv weights are stored pre-reshaped (K*C_in, C_out) and pre-cast to bf16 at creation time.

class ParamGen:
    def __init__(self, seed):
        self._key = jax.random.PRNGKey(seed)

    def take(self, shape, fan_in):
        self._key, sub = jax.random.split(self._key)
        return (jax.random.normal(sub, shape, jnp.float32)
                / np.sqrt(float(fan_in))).astype(jnp.bfloat16)


def make_block_params(pg, cin, cout):
    """ResidualBlock: BN-ReLU-SubM(3) - BN-ReLU-SubM(3); i_branch SubM(1) if cin != cout."""
    p = {}
    if cin != cout:
        p['i_w'] = pg.take((cin, cout), cin)
    p['conv1'] = pg.take((27 * cin, cout), cin * 27)
    p['conv2'] = pg.take((27 * cout, cout), cout * 27)
    return p


def make_ublock_params(pg, n_planes, block_reps):
    p = {'blocks': [make_block_params(pg, n_planes[0], n_planes[0]) for _ in range(block_reps)]}
    if len(n_planes) > 1:
        p['conv'] = pg.take((8 * n_planes[0], n_planes[1]), n_planes[0] * 8)
        p['u'] = make_ublock_params(pg, n_planes[1:], block_reps)
        p['deconv'] = pg.take((8 * n_planes[1], n_planes[0]), n_planes[1] * 8)
        p['blocks_tail'] = [make_block_params(pg, n_planes[0] * (2 - i), n_planes[0])
                            for i in range(block_reps)]
    return p


# ------------------------------ forward pass ------------------------------

def residual_block_forward(p, feats, subm_idx):
    identity = linear_nobias(feats, p['i_w']) if 'i_w' in p else feats
    x = bn_relu_sparse_conv(feats, subm_idx, p['conv1'])                    # BN-ReLU-SubM(3)
    x = bn_relu_sparse_conv(x, subm_idx, p['conv2'], identity=identity)     # BN-ReLU-SubM(3) + id
    return x


def ublock_forward(p, feats, level):
    for bp in p['blocks']:
        feats = residual_block_forward(bp, feats, level['subm_idx'])
    if 'u' in p:
        identity = feats
        x = bn_relu_sparse_conv(feats, level['down_idx'], p['conv'])    # norm-ReLU-SparseConv3d k2 s2
        x = ublock_forward(p['u'], x, level['child'])
        x = bn_relu_sparse_conv(x, level['up_idx'], p['deconv'])        # norm-ReLU-SparseInverseConv3d k2
        feats = jnp.concatenate([identity, x], axis=1)
        for bp in p['blocks_tail']:
            feats = residual_block_forward(bp, feats, level['subm_idx'])
    return feats


# ------------------------------ main ------------------------------

if __name__ == "__main__":
    # Small configuration consistent with PointGroup's UBlock usage:
    #   block = ResidualBlock, norm_fn = BatchNorm1d(eps=1e-4), block_reps = 2,
    #   nPlanes = [m, 2m, 3m, 4m] with m = 8.
    m = 8
    block_reps = 2
    n_planes = [m, 2 * m, 3 * m, 4 * m]

    key = jax.random.PRNGKey(0)
    k_coords, k_feats = jax.random.split(key)

    batch_size, pts_per_batch, spatial = 2, 256, 16
    xyz = jax.random.randint(k_coords, (batch_size * pts_per_batch, 3), 0, spatial,
                             dtype=jnp.int32)
    b_idx = np.repeat(np.arange(batch_size, dtype=np.int32), pts_per_batch)[:, None]
    coords = np.unique(np.concatenate([b_idx, np.asarray(xyz)], axis=1), axis=0).astype(np.int32)
    n_vox = coords.shape[0]

    feats = jax.random.normal(k_feats, (n_vox, n_planes[0]), jnp.float32).astype(jnp.bfloat16)

    level0 = build_levels(coords, depth=len(n_planes))
    params = make_ublock_params(ParamGen(seed=0), n_planes, block_reps)

    out = ublock_forward(params, feats, level0)
    out = jax.block_until_ready(out)

    assert out.shape == (n_vox, n_planes[0])
    assert np.all(np.isfinite(np.asarray(out.astype(jnp.float32))))
    print("KERNEL_OK")
</pallas_src>

<mosaic_0001>
module attributes {stable_mosaic.version = 11 : i64} {
  func.func @_conv_bn_relu_kernel(%arg0: i32, %arg1: memref<496x216xbf16, #tpu.memory_space<vmem>>, %arg2: memref<1x216xf32, #tpu.memory_space<vmem>>, %arg3: memref<1x216xf32, #tpu.memory_space<vmem>>, %arg4: memref<216x8xbf16, #tpu.memory_space<vmem>>, %arg5: memref<496x8xbf16, #tpu.memory_space<vmem>>) attributes {dimension_semantics = [#tpu.dimension_semantics<parallel>], iteration_bounds = array<i64: 1>, scalar_prefetch = 0 : i64, scratch_operands = 0 : i64, tpu.core_type = #tpu.core_type<tc>, window_params = [{transform_indices = @transform_0, window_bounds = array<i64: 496, 216>}, {pipeline_mode = #tpu.pipeline_mode<synchronous>, transform_indices = @transform_1, window_bounds = array<i64: 1, 216>}, {pipeline_mode = #tpu.pipeline_mode<synchronous>, transform_indices = @transform_2, window_bounds = array<i64: 1, 216>}, {pipeline_mode = #tpu.pipeline_mode<synchronous>, transform_indices = @transform_3, window_bounds = array<i64: 216, 8>}, {transform_indices = @transform_4, window_bounds = array<i64: 496, 8>}]} {
    %c0 = arith.constant 0 : index
    %c0_0 = arith.constant 0 : index
    %0 = vector.load %arg1[%c0, %c0_0] : memref<496x216xbf16, #tpu.memory_space<vmem>>, vector<496x216xbf16>
    %1 = arith.extf %0 : vector<496x216xbf16> to vector<496x216xf32>
    %c0_1 = arith.constant 0 : index
    %c0_2 = arith.constant 0 : index
    %2 = vector.load %arg2[%c0_1, %c0_2] : memref<1x216xf32, #tpu.memory_space<vmem>>, vector<1x216xf32>
    %3 = vector.broadcast %2 : vector<1x216xf32> to vector<496x216xf32>
    %4 = arith.mulf %1, %3 : vector<496x216xf32>
    %c0_3 = arith.constant 0 : index
    %c0_4 = arith.constant 0 : index
    %5 = vector.load %arg3[%c0_3, %c0_4] : memref<1x216xf32, #tpu.memory_space<vmem>>, vector<1x216xf32>
    %6 = vector.broadcast %5 : vector<1x216xf32> to vector<496x216xf32>
    %7 = arith.addf %4, %6 : vector<496x216xf32>
    %cst = arith.constant 0.000000e+00 : f32
    %8 = vector.broadcast %cst : f32 to vector<496x216xf32>
    %9 = arith.maximumf %7, %8 : vector<496x216xf32>
    %10 = arith.truncf %9 : vector<496x216xf32> to vector<496x216xbf16>
    %c0_5 = arith.constant 0 : index
    %c0_6 = arith.constant 0 : index
    %11 = vector.load %arg4[%c0_5, %c0_6] : memref<216x8xbf16, #tpu.memory_space<vmem>>, vector<216x8xbf16>
    %cst_7 = arith.constant dense<0.000000e+00> : vector<496x8xf32>
    %12 = tpu.matmul %10, %11, %cst_7 {dimension_numbers = #tpu.dot_dimension_numbers<[1], [0], [0], [1], [0, 0, 1, 1], [], []>} : vector<496x216xbf16>, vector<216x8xbf16>, vector<496x8xf32> -> vector<496x8xf32>
    %13 = arith.truncf %12 : vector<496x8xf32> to vector<496x8xbf16>
    %c0_8 = arith.constant 0 : index
    %c0_9 = arith.constant 0 : index
    %14 = vector.load %arg5[%c0_8, %c0_9] : memref<496x8xbf16, #tpu.memory_space<vmem>>, vector<496x8xbf16>
    tpu.vector_store %arg5[%c0_8, %c0_9], %13 {strides = array<i32>} : memref<496x8xbf16, #tpu.memory_space<vmem>>, vector<496x8xbf16>,
    return
  }
  func.func @transform_0(%arg0: i32) -> (i32, i32) {
    %c0_i32 = arith.constant 0 : i32
    %c0_i32_0 = arith.constant 0 : i32
    return %arg0, %c0_i32 : i32, i32
  }
  func.func @transform_1(%arg0: i32) -> (i32, i32) {
    %c0_i32 = arith.constant 0 : i32
    %c0_i32_0 = arith.constant 0 : i32
    %c0_i32_1 = arith.constant 0 : i32
    return %c0_i32, %c0_i32_0 : i32, i32
  }
  func.func @transform_2(%arg0: i32) -> (i32, i32) {
    %c0_i32 = arith.constant 0 : i32
    %c0_i32_0 = arith.constant 0 : i32
    %c0_i32_1 = arith.constant 0 : i32
    return %c0_i32, %c0_i32_0 : i32, i32
  }
  func.func @transform_3(%arg0: i32) -> (i32, i32) {
    %c0_i32 = arith.constant 0 : i32
    %c0_i32_0 = arith.constant 0 : i32
    %c0_i32_1 = arith.constant 0 : i32
    return %c0_i32, %c0_i32_0 : i32, i32
  }
  func.func @transform_4(%arg0: i32) -> (i32, i32) {
    %c0_i32 = arith.constant 0 : i32
    %c0_i32_0 = arith.constant 0 : i32
    return %arg0, %c0_i32 : i32, i32
  }
}

</mosaic_0001>

<llo_original>
// kernel: tpu_custom_call.1
$region0: #{tpu_custom_call.1}
  #allocation0 [shape = 'u32[]', space=smem, size = 0x4, offset = 0x4, fixed_abs, tag = 'smem constant byte address 0x4 - core index']
  #allocation1 [shape = 'u32[144,128]{1,0:T(1,128)}', space=vmem, size = 0x12000, scoped, tag = 'internal scratch']
  %s0 = inlined_call_operand.vmem [shape: bf16[492,216], index: 0, kind: input, shape index: {}]
  %s1 = inlined_call_operand.vmem [shape: f32[1,216], index: 1, kind: input, shape index: {}]
  %s2 = inlined_call_operand.vmem [shape: f32[1,216], index: 2, kind: input, shape index: {}]
  %s3 = inlined_call_operand.vmem [shape: bf16[216,8], index: 3, kind: input, shape index: {}]
  %s4 = inlined_call_operand.vmem [shape: bf16[492,8], index: 4, kind: output, shape index: {}]
  %s5 = sld [smem:[#allocation0]]
  $region26: #{tpu_custom_call.1} parent=0
    _
  %s7 = ssub.s32 1, %s5
  %s8 = scalar_select 0, %s7, %s5
  // Predicated region
  $region2: #{tpu_custom_call.1} parent=0 // pred_check
    _
  $region3: #{tpu_custom_call.1} parent=0 // pred_check_branch
    %10 = sbr.rel (0) target = $region5
  $region4: #{tpu_custom_call.1} parent=0 // pred_region
    _
  $region5: #{tpu_custom_call.1} parent=0 // pred_fallthru
    _
  // Predicated region
  $region6: #{tpu_custom_call.1} parent=0 // pred_check
    _
  $region7: #{tpu_custom_call.1} parent=0 // pred_check_branch
    %12 = sbr.rel (0) target = $region9
  $region8: #{tpu_custom_call.1} parent=0 // pred_region
    _
  $region9: #{tpu_custom_call.1} parent=0 // pred_fallthru
    _
  // Predicated region
  $region10: #{tpu_custom_call.1} parent=0 // pred_check
    _
  $region11: #{tpu_custom_call.1} parent=0 // pred_check_branch
    %14 = sbr.rel (0) target = $region13
  $region12: #{tpu_custom_call.1} parent=0 // pred_region
    _
  $region13: #{tpu_custom_call.1} parent=0 // pred_fallthru
    _
  // Predicated region
  $region14: #{tpu_custom_call.1} parent=0 // pred_check
    _
  $region15: #{tpu_custom_call.1} parent=0 // pred_check_branch
    %16 = sbr.rel (0) target = $region17
  $region16: #{tpu_custom_call.1} parent=0 // pred_region
    _
  $region17: #{tpu_custom_call.1} parent=0 // pred_fallthru
    _
  %v18 = vld [vmem:[%s0] sm:$0xff]
  %v19 = vld [vmem:[%s0 + $0x8] sm:$0xff]
  %v20 = vld [vmem:[%s0 + $0x10] sm:$0xff]
  %v21 = vld [vmem:[%s0 + $0x18] sm:$0xff]
  %v22 = vld [vmem:[%s0 + $0x20] sm:$0xff]
  %v23 = vld [vmem:[%s0 + $0x28] sm:$0xff]
  %v24 = vld [vmem:[%s0 + $0x30] sm:$0xff]
  %v25 = vld [vmem:[%s0 + $0x38] sm:$0xff]
  %v26 = vld [vmem:[%s0 + $0x40] sm:$0xff]
  %v27 = vld [vmem:[%s0 + $0x48] sm:$0xff]
  %v28 = vld [vmem:[%s0 + $0x50] sm:$0xff]
  %v29 = vld [vmem:[%s0 + $0x58] sm:$0xff]
  %v30 = vld [vmem:[%s0 + $0x60] sm:$0xff]
  %v31 = vld [vmem:[%s0 + $0x68] sm:$0xff]
  %v32 = vld [vmem:[%s0 + $0x70] sm:$0xff]
  %v33 = vld [vmem:[%s0 + $0x78] sm:$0xff]
  %v34 = vld [vmem:[%s0 + $0x80] sm:$0xff]
  %v35 = vld [vmem:[%s0 + $0x88] sm:$0xff]
  %v36 = vld [vmem:[%s0 + $0x90] sm:$0xff]
  %v37 = vld [vmem:[%s0 + $0x98] sm:$0xff]
  %v38 = vld [vmem:[%s0 + $0xa0] sm:$0xff]
  %v39 = vld [vmem:[%s0 + $0xa8] sm:$0xff]
  %v40 = vld [vmem:[%s0 + $0xb0] sm:$0xff]
  %v41 = vld [vmem:[%s0 + $0xb8] sm:$0xff]
  %v42 = vld [vmem:[%s0 + $0xc0] sm:$0xff]
  %v43 = vld [vmem:[%s0 + $0xc8] sm:$0xff]
  %v44 = vld [vmem:[%s0 + $0xd0] sm:$0xff]
  %v45 = vld [vmem:[%s0 + $0xd8] sm:$0xff]
  %v46 = vld [vmem:[%s0 + $0xe0] sm:$0xff]
  %v47 = vld [vmem:[%s0 + $0xe8] sm:$0xff]
  %v48 = vld [vmem:[%s0 + $0xf0] sm:$0xff]
  %v49 = vld [vmem:[%s0 + $0xf8] sm:$0xff]
  %v50 = vld [vmem:[%s0 + $0x100] sm:$0xff]
  %v51 = vld [vmem:[%s0 + $0x108] sm:$0xff]
  %v52 = vld [vmem:[%s0 + $0x110] sm:$0xff]
  %v53 = vld [vmem:[%s0 + $0x118] sm:$0xff]
  %v54 = vld [vmem:[%s0 + $0x120] sm:$0xff]
  %v55 = vld [vmem:[%s0 + $0x128] sm:$0xff]
  %v56 = vld [vmem:[%s0 + $0x130] sm:$0xff]
  %v57 = vld [vmem:[%s0 + $0x138] sm:$0xff]
  %v58 = vld [vmem:[%s0 + $0x140] sm:$0xff]
  %v59 = vld [vmem:[%s0 + $0x148] sm:$0xff]
  %v60 = vld [vmem:[%s0 + $0x150] sm:$0xff]
  %v61 = vld [vmem:[%s0 + $0x158] sm:$0xff]
  %v62 = vld [vmem:[%s0 + $0x160] sm:$0xff]
  %v63 = vld [vmem:[%s0 + $0x168] sm:$0xff]
  %v64 = vld [vmem:[%s0 + $0x170] sm:$0xff]
  %v65 = vld [vmem:[%s0 + $0x178] sm:$0xff]
  %v66 = vld [vmem:[%s0 + $0x180] sm:$0xff]
  %v67 = vld [vmem:[%s0 + $0x188] sm:$0xff]
  %v68 = vld [vmem:[%s0 + $0x190] sm:$0xff]
  %v69 = vld [vmem:[%s0 + $0x198] sm:$0xff]
  %v70 = vld [vmem:[%s0 + $0x1a0] sm:$0xff]
  %v71 = vld [vmem:[%s0 + $0x1a8] sm:$0xff]
  %v72 = vld [vmem:[%s0 + $0x1b0] sm:$0xff]
  %v73 = vld [vmem:[%s0 + $0x1b8] sm:$0xff]
  %v74 = vld [vmem:[%s0 + $0x1c0] sm:$0xff]
  %v75 = vld [vmem:[%s0 + $0x1c8] sm:$0xff]
  %v76 = vld [vmem:[%s0 + $0x1d0] sm:$0xff]
  %v77 = vld [vmem:[%s0 + $0x1d8] sm:$0xff]
  %v78 = vld [vmem:[%s0 + $0x1e0] sm:$0xff]
  %v79 = vld [vmem:[%s0 + $0x1e8] sm:$0xff]
  %v80 = vunpack.c.l.bf16 %v18
  %v81 = vunpack.c.h.bf16 %v18
  %v82 = vunpack.c.l.bf16 %v19
  %v83 = vunpack.c.h.bf16 %v19
  %v84 = vunpack.c.l.bf16 %v20
  %v85 = vunpack.c.h.bf16 %v20
  %v86 = vunpack.c.l.bf16 %v21
  %v87 = vunpack.c.h.bf16 %v21
  %v88 = vunpack.c.l.bf16 %v22
  %v89 = vunpack.c.h.bf16 %v22
  %v90 = vunpack.c.l.bf16 %v23
  %v91 = vunpack.c.h.bf16 %v23
  %v92 = vunpack.c.l.bf16 %v24
  %v93 = vunpack.c.h.bf16 %v24
  %v94 = vunpack.c.l.bf16 %v25
  %v95 = vunpack.c.h.bf16 %v25
  %v96 = vunpack.c.l.bf16 %v26
  %v97 = vunpack.c.h.bf16 %v26
  %v98 = vunpack.c.l.bf16 %v27
  %v99 = vunpack.c.h.bf16 %v27
  %v100 = vunpack.c.l.bf16 %v28
  %v101 = vunpack.c.h.bf16 %v28
  %v102 = vunpack.c.l.bf16 %v29
  %v103 = vunpack.c.h.bf16 %v29
  %v104 = vunpack.c.l.bf16 %v30
  %v105 = vunpack.c.h.bf16 %v30
  %v106 = vunpack.c.l.bf16 %v31
  %v107 = vunpack.c.h.bf16 %v31
  %v108 = vunpack.c.l.bf16 %v32
  %v109 = vunpack.c.h.bf16 %v32
  %v110 = vunpack.c.l.bf16 %v33
  %v111 = vunpack.c.h.bf16 %v33
  %v112 = vunpack.c.l.bf16 %v34
  %v113 = vunpack.c.h.bf16 %v34
  %v114 = vunpack.c.l.bf16 %v35
  %v115 = vunpack.c.h.bf16 %v35
  %v116 = vunpack.c.l.bf16 %v36
  %v117 = vunpack.c.h.bf16 %v36
  %v118 = vunpack.c.l.bf16 %v37
  %v119 = vunpack.c.h.bf16 %v37
  %v120 = vunpack.c.l.bf16 %v38
  %v121 = vunpack.c.h.bf16 %v38
  %v122 = vunpack.c.l.bf16 %v39
  %v123 = vunpack.c.h.bf16 %v39
  %v124 = vunpack.c.l.bf16 %v40
  %v125 = vunpack.c.h.bf16 %v40
  %v126 = vunpack.c.l.bf16 %v41
  %v127 = vunpack.c.h.bf16 %v41
  %v128 = vunpack.c.l.bf16 %v42
  %v129 = vunpack.c.h.bf16 %v42
  %v130 = vunpack.c.l.bf16 %v43
  %v131 = vunpack.c.h.bf16 %v43
  %v132 = vunpack.c.l.bf16 %v44
  %v133 = vunpack.c.h.bf16 %v44
  %v134 = vunpack.c.l.bf16 %v45
  %v135 = vunpack.c.h.bf16 %v45
  %v136 = vunpack.c.l.bf16 %v46
  %v137 = vunpack.c.h.bf16 %v46
  %v138 = vunpack.c.l.bf16 %v47
  %v139 = vunpack.c.h.bf16 %v47
  %v140 = vunpack.c.l.bf16 %v48
  %v141 = vunpack.c.h.bf16 %v48
  %v142 = vunpack.c.l.bf16 %v49
  %v143 = vunpack.c.h.bf16 %v49
  %v144 = vunpack.c.l.bf16 %v50
  %v145 = vunpack.c.h.bf16 %v50
  %v146 = vunpack.c.l.bf16 %v51
  %v147 = vunpack.c.h.bf16 %v51
  %v148 = vunpack.c.l.bf16 %v52
  %v149 = vunpack.c.h.bf16 %v52
  %v150 = vunpack.c.l.bf16 %v53
  %v151 = vunpack.c.h.bf16 %v53
  %v152 = vunpack.c.l.bf16 %v54
  %v153 = vunpack.c.h.bf16 %v54
  %v154 = vunpack.c.l.bf16 %v55
  %v155 = vunpack.c.h.bf16 %v55
  %v156 = vunpack.c.l.bf16 %v56
  %v157 = vunpack.c.h.bf16 %v56
  %v158 = vunpack.c.l.bf16 %v57
  %v159 = vunpack.c.h.bf16 %v57
  %v160 = vunpack.c.l.bf16 %v58
  %v161 = vunpack.c.h.bf16 %v58
  %v162 = vunpack.c.l.bf16 %v59
  %v163 = vunpack.c.h.bf16 %v59
  %v164 = vunpack.c.l.bf16 %v60
  %v165 = vunpack.c.h.bf16 %v60
  %v166 = vunpack.c.l.bf16 %v61
  %v167 = vunpack.c.h.bf16 %v61
  %v168 = vunpack.c.l.bf16 %v62
  %v169 = vunpack.c.h.bf16 %v62
  %v170 = vunpack.c.l.bf16 %v63
  %v171 = vunpack.c.h.bf16 %v63
  %v172 = vunpack.c.l.bf16 %v64
  %v173 = vunpack.c.h.bf16 %v64
  %v174 = vunpack.c.l.bf16 %v65
  %v175 = vunpack.c.h.bf16 %v65
  %v176 = vunpack.c.l.bf16 %v66
  %v177 = vunpack.c.h.bf16 %v66
  %v178 = vunpack.c.l.bf16 %v67
  %v179 = vunpack.c.h.bf16 %v67
  %v180 = vunpack.c.l.bf16 %v68
  %v181 = vunpack.c.h.bf16 %v68
  %v182 = vunpack.c.l.bf16 %v69
  %v183 = vunpack.c.h.bf16 %v69
  %v184 = vunpack.c.l.bf16 %v70
  %v185 = vunpack.c.h.bf16 %v70
  %v186 = vunpack.c.l.bf16 %v71
  %v187 = vunpack.c.h.bf16 %v71
  %v188 = vunpack.c.l.bf16 %v72
  %v189 = vunpack.c.h.bf16 %v72
  %v190 = vunpack.c.l.bf16 %v73
  %v191 = vunpack.c.h.bf16 %v73
  %v192 = vunpack.c.l.bf16 %v74
  %v193 = vunpack.c.h.bf16 %v74
  %v194 = vunpack.c.l.bf16 %v75
  %v195 = vunpack.c.h.bf16 %v75
  %v196 = vunpack.c.l.bf16 %v76
  %v197 = vunpack.c.h.bf16 %v76
  %v198 = vunpack.c.l.bf16 %v77
  %v199 = vunpack.c.h.bf16 %v77
  %v200 = vunpack.c.l.bf16 %v78
  %v201 = vunpack.c.h.bf16 %v78
  %v202 = vunpack.c.l.bf16 %v79
  %v203 = vunpack.c.h.bf16 %v79
  %v204 = vld [vmem:[%s1] sm:$0x3]
  %v206 = vlaneseq
  %v207 = vshrl.u32 %v206, 7
  %v208 = vsub.s32 0, %v207
  %v209 = vrot.slane %v204, %v208
  %v210 = vlaneseq
  %v211 = vshrl.u32 %v210, 7
  %v212 = vsub.s32 1, %v211
  %v213 = vrot.slane %v204, %v212
  %v216 = vmul.f32 %v80, %v209
  %v217 = vmul.f32 %v81, %v213
  %v218 = vmul.f32 %v82, %v209
  %v219 = vmul.f32 %v83, %v213
  %v220 = vmul.f32 %v84, %v209
  %v221 = vmul.f32 %v85, %v213
  %v222 = vmul.f32 %v86, %v209
  %v223 = vmul.f32 %v87, %v213
  %v224 = vmul.f32 %v88, %v209
  %v225 = vmul.f32 %v89, %v213
  %v226 = vmul.f32 %v90, %v209
  %v227 = vmul.f32 %v91, %v213
  %v228 = vmul.f32 %v92, %v209
  %v229 = vmul.f32 %v93, %v213
  %v230 = vmul.f32 %v94, %v209
  %v231 = vmul.f32 %v95, %v213
  %v232 = vmul.f32 %v96, %v209
  %v233 = vmul.f32 %v97, %v213
  %v234 = vmul.f32 %v98, %v209
  %v235 = vmul.f32 %v99, %v213
  %v236 = vmul.f32 %v100, %v209
  %v237 = vmul.f32 %v101, %v213
  %v238 = vmul.f32 %v102, %v209
  %v239 = vmul.f32 %v103, %v213
  %v240 = vmul.f32 %v104, %v209
  %v241 = vmul.f32 %v105, %v213
  %v242 = vmul.f32 %v106, %v209
  %v243 = vmul.f32 %v107, %v213
  %v244 = vmul.f32 %v108, %v209
  %v245 = vmul.f32 %v109, %v213
  %v246 = vmul.f32 %v110, %v209
  %v247 = vmul.f32 %v111, %v213
  %v248 = vmul.f32 %v112, %v209
  %v249 = vmul.f32 %v113, %v213
  %v250 = vmul.f32 %v114, %v209
  %v251 = vmul.f32 %v115, %v213
  %v252 = vmul.f32 %v116, %v209
  %v253 = vmul.f32 %v117, %v213
  %v254 = vmul.f32 %v118, %v209
  %v255 = vmul.f32 %v119, %v213
  %v256 = vmul.f32 %v120, %v209
  %v257 = vmul.f32 %v121, %v213
  %v258 = vmul.f32 %v122, %v209
  %v259 = vmul.f32 %v123, %v213
  %v260 = vmul.f32 %v124, %v209
  %v261 = vmul.f32 %v125, %v213
  %v262 = vmul.f32 %v126, %v209
  %v263 = vmul.f32 %v127, %v213
  %v264 = vmul.f32 %v128, %v209
  %v265 = vmul.f32 %v129, %v213
  %v266 = vmul.f32 %v130, %v209
  %v267 = vmul.f32 %v131, %v213
  %v268 = vmul.f32 %v132, %v209
  %v269 = vmul.f32 %v133, %v213
  %v270 = vmul.f32 %v134, %v209
  %v271 = vmul.f32 %v135, %v213
  %v272 = vmul.f32 %v136, %v209
  %v273 = vmul.f32 %v137, %v213
  %v274 = vmul.f32 %v138, %v209
  %v275 = vmul.f32 %v139, %v213
  %v276 = vmul.f32 %v140, %v209
  %v277 = vmul.f32 %v141, %v213
  %v278 = vmul.f32 %v142, %v209
  %v279 = vmul.f32 %v143, %v213
  %v280 = vmul.f32 %v144, %v209
  %v281 = vmul.f32 %v145, %v213
  %v282 = vmul.f32 %v146, %v209
  %v283 = vmul.f32 %v147, %v213
  %v284 = vmul.f32 %v148, %v209
  %v285 = vmul.f32 %v149, %v213
  %v286 = vmul.f32 %v150, %v209
  %v287 = vmul.f32 %v151, %v213
  %v288 = vmul.f32 %v152, %v209
  %v289 = vmul.f32 %v153, %v213
  %v290 = vmul.f32 %v154, %v209
  %v291 = vmul.f32 %v155, %v213
  %v292 = vmul.f32 %v156, %v209
  %v293 = vmul.f32 %v157, %v213
  %v294 = vmul.f32 %v158, %v209
  %v295 = vmul.f32 %v159, %v213
  %v296 = vmul.f32 %v160, %v209
  %v297 = vmul.f32 %v161, %v213
  %v298 = vmul.f32 %v162, %v209
  %v299 = vmul.f32 %v163, %v213
  %v300 = vmul.f32 %v164, %v209
  %v301 = vmul.f32 %v165, %v213
  %v302 = vmul.f32 %v166, %v209
  %v303 = vmul.f32 %v167, %v213
  %v304 = vmul.f32 %v168, %v209
  %v305 = vmul.f32 %v169, %v213
  %v306 = vmul.f32 %v170, %v209
  %v307 = vmul.f32 %v171, %v213
  %v308 = vmul.f32 %v172, %v209
  %v309 = vmul.f32 %v173, %v213
  %v310 = vmul.f32 %v174, %v209
  %v311 = vmul.f32 %v175, %v213
  %v312 = vmul.f32 %v176, %v209
  %v313 = vmul.f32 %v177, %v213
  %v314 = vmul.f32 %v178, %v209
  %v315 = vmul.f32 %v179, %v213
  %v316 = vmul.f32 %v180, %v209
  %v317 = vmul.f32 %v181, %v213
  %v318 = vmul.f32 %v182, %v209
  %v319 = vmul.f32 %v183, %v213
  %v320 = vmul.f32 %v184, %v209
  %v321 = vmul.f32 %v185, %v213
  %v322 = vmul.f32 %v186, %v209
  %v323 = vmul.f32 %v187, %v213
  %v324 = vmul.f32 %v188, %v209
  %v325 = vmul.f32 %v189, %v213
  %v326 = vmul.f32 %v190, %v209
  %v327 = vmul.f32 %v191, %v213
  %v328 = vmul.f32 %v192, %v209
  %v329 = vmul.f32 %v193, %v213
  %v330 = vmul.f32 %v194, %v209
  %v331 = vmul.f32 %v195, %v213
  %v332 = vmul.f32 %v196, %v209
  %v333 = vmul.f32 %v197, %v213
  %v334 = vmul.f32 %v198, %v209
  %v335 = vmul.f32 %v199, %v213
  %v336 = vmul.f32 %v200, %v209
  %v337 = vmul.f32 %v201, %v213
  %v338 = vmul.f32 %v202, %v209
  %v339 = vmul.f32 %v203, %v213
  %v340 = vld [vmem:[%s2] sm:$0x3]
  %v342 = vlaneseq
  %v343 = vshrl.u32 %v342, 7
  %v344 = vsub.s32 0, %v343
  %v345 = vrot.slane %v340, %v344
  %v346 = vlaneseq
  %v347 = vshrl.u32 %v346, 7
  %v348 = vsub.s32 1, %v347
  %v349 = vrot.slane %v340, %v348
  %v352 = vadd.f32 %v216, %v345
  %v353 = vadd.f32 %v217, %v349
  %v354 = vadd.f32 %v218, %v345
  %v355 = vadd.f32 %v219, %v349
  %v356 = vadd.f32 %v220, %v345
  %v357 = vadd.f32 %v221, %v349
  %v358 = vadd.f32 %v222, %v345
  %v359 = vadd.f32 %v223, %v349
  %v360 = vadd.f32 %v224, %v345
  %v361 = vadd.f32 %v225, %v349
  %v362 = vadd.f32 %v226, %v345
  %v363 = vadd.f32 %v227, %v349
  %v364 = vadd.f32 %v228, %v345
  %v365 = vadd.f32 %v229, %v349
  %v366 = vadd.f32 %v230, %v345
  %v367 = vadd.f32 %v231, %v349
  %v368 = vadd.f32 %v232, %v345
  %v369 = vadd.f32 %v233, %v349
  %v370 = vadd.f32 %v234, %v345
  %v371 = vadd.f32 %v235, %v349
  %v372 = vadd.f32 %v236, %v345
  %v373 = vadd.f32 %v237, %v349
  %v374 = vadd.f32 %v238, %v345
  %v375 = vadd.f32 %v239, %v349
  %v376 = vadd.f32 %v240, %v345
  %v377 = vadd.f32 %v241, %v349
  %v378 = vadd.f32 %v242, %v345
  %v379 = vadd.f32 %v243, %v349
  %v380 = vadd.f32 %v244, %v345
  %v381 = vadd.f32 %v245, %v349
  %v382 = vadd.f32 %v246, %v345
  %v383 = vadd.f32 %v247, %v349
  %v384 = vadd.f32 %v248, %v345
  %v385 = vadd.f32 %v249, %v349
  %v386 = vadd.f32 %v250, %v345
  %v387 = vadd.f32 %v251, %v349
  %v388 = vadd.f32 %v252, %v345
  %v389 = vadd.f32 %v253, %v349
  %v390 = vadd.f32 %v254, %v345
  %v391 = vadd.f32 %v255, %v349
  %v392 = vadd.f32 %v256, %v345
  %v393 = vadd.f32 %v257, %v349
  %v394 = vadd.f32 %v258, %v345
  %v395 = vadd.f32 %v259, %v349
  %v396 = vadd.f32 %v260, %v345
  %v397 = vadd.f32 %v261, %v349
  %v398 = vadd.f32 %v262, %v345
  %v399 = vadd.f32 %v263, %v349
  %v400 = vadd.f32 %v264, %v345
  %v401 = vadd.f32 %v265, %v349
  %v402 = vadd.f32 %v266, %v345
  %v403 = vadd.f32 %v267, %v349
  %v404 = vadd.f32 %v268, %v345
  %v405 = vadd.f32 %v269, %v349
  %v406 = vadd.f32 %v270, %v345
  %v407 = vadd.f32 %v271, %v349
  %v408 = vadd.f32 %v272, %v345
  %v409 = vadd.f32 %v273, %v349
  %v410 = vadd.f32 %v274, %v345
  %v411 = vadd.f32 %v275, %v349
  %v412 = vadd.f32 %v276, %v345
  %v413 = vadd.f32 %v277, %v349
  %v414 = vadd.f32 %v278, %v345
  %v415 = vadd.f32 %v279, %v349
  %v416 = vadd.f32 %v280, %v345
  %v417 = vadd.f32 %v281, %v349
  %v418 = vadd.f32 %v282, %v345
  %v419 = vadd.f32 %v283, %v349
  %v420 = vadd.f32 %v284, %v345
  %v421 = vadd.f32 %v285, %v349
  %v422 = vadd.f32 %v286, %v345
  %v423 = vadd.f32 %v287, %v349
  %v424 = vadd.f32 %v288, %v345
  %v425 = vadd.f32 %v289, %v349
  %v426 = vadd.f32 %v290, %v345
  %v427 = vadd.f32 %v291, %v349
  %v428 = vadd.f32 %v292, %v345
  %v429 = vadd.f32 %v293, %v349
  %v430 = vadd.f32 %v294, %v345
  %v431 = vadd.f32 %v295, %v349
  %v432 = vadd.f32 %v296, %v345
  %v433 = vadd.f32 %v297, %v349
  %v434 = vadd.f32 %v298, %v345
  %v435 = vadd.f32 %v299, %v349
  %v436 = vadd.f32 %v300, %v345
  %v437 = vadd.f32 %v301, %v349
  %v438 = vadd.f32 %v302, %v345
  %v439 = vadd.f32 %v303, %v349
  %v440 = vadd.f32 %v304, %v345
  %v441 = vadd.f32 %v305, %v349
  %v442 = vadd.f32 %v306, %v345
  %v443 = vadd.f32 %v307, %v349
  %v444 = vadd.f32 %v308, %v345
  %v445 = vadd.f32 %v309, %v349
  %v446 = vadd.f32 %v310, %v345
  %v447 = vadd.f32 %v311, %v349
  %v448 = vadd.f32 %v312, %v345
  %v449 = vadd.f32 %v313, %v349
  %v450 = vadd.f32 %v314, %v345
  %v451 = vadd.f32 %v315, %v349
  %v452 = vadd.f32 %v316, %v345
  %v453 = vadd.f32 %v317, %v349
  %v454 = vadd.f32 %v318, %v345
  %v455 = vadd.f32 %v319, %v349
  %v456 = vadd.f32 %v320, %v345
  %v457 = vadd.f32 %v321, %v349
  %v458 = vadd.f32 %v322, %v345
  %v459 = vadd.f32 %v323, %v349
  %v460 = vadd.f32 %v324, %v345
  %v461 = vadd.f32 %v325, %v349
  %v462 = vadd.f32 %v326, %v345
  %v463 = vadd.f32 %v327, %v349
  %v464 = vadd.f32 %v328, %v345
  %v465 = vadd.f32 %v329, %v349
  %v466 = vadd.f32 %v330, %v345
  %v467 = vadd.f32 %v331, %v349
  %v468 = vadd.f32 %v332, %v345
  %v469 = vadd.f32 %v333, %v349
  %v470 = vadd.f32 %v334, %v345
  %v471 = vadd.f32 %v335, %v349
  %v472 = vadd.f32 %v336, %v345
  %v473 = vadd.f32 %v337, %v349
  %v474 = vadd.f32 %v338, %v345
  %v475 = vadd.f32 %v339, %v349
  %v476 = vmax.f32 %v352, 0.0
  %v477 = vmax.f32 %v353, 0.0
  %v478 = vmax.f32 %v354, 0.0
  %v479 = vmax.f32 %v355, 0.0
  %v480 = vmax.f32 %v356, 0.0
  %v481 = vmax.f32 %v357, 0.0
  %v482 = vmax.f32 %v358, 0.0
  %v483 = vmax.f32 %v359, 0.0
  %v484 = vmax.f32 %v360, 0.0
  %v485 = vmax.f32 %v361, 0.0
  %v486 = vmax.f32 %v362, 0.0
  %v487 = vmax.f32 %v363, 0.0
  %v488 = vmax.f32 %v364, 0.0
  %v489 = vmax.f32 %v365, 0.0
  %v490 = vmax.f32 %v366, 0.0
  %v491 = vmax.f32 %v367, 0.0
  %v492 = vmax.f32 %v368, 0.0
  %v493 = vmax.f32 %v369, 0.0
  %v494 = vmax.f32 %v370, 0.0
  %v495 = vmax.f32 %v371, 0.0
  %v496 = vmax.f32 %v372, 0.0
  %v497 = vmax.f32 %v373, 0.0
  %v498 = vmax.f32 %v374, 0.0
  %v499 = vmax.f32 %v375, 0.0
  %v500 = vmax.f32 %v376, 0.0
  %v501 = vmax.f32 %v377, 0.0
  %v502 = vmax.f32 %v378, 0.0
  %v503 = vmax.f32 %v379, 0.0
  %v504 = vmax.f32 %v380, 0.0
  %v505 = vmax.f32 %v381, 0.0
  %v506 = vmax.f32 %v382, 0.0
  %v507 = vmax.f32 %v383, 0.0
  %v508 = vmax.f32 %v384, 0.0
  %v509 = vmax.f32 %v385, 0.0
  %v510 = vmax.f32 %v386, 0.0
  %v511 = vmax.f32 %v387, 0.0
  %v512 = vmax.f32 %v388, 0.0
  %v513 = vmax.f32 %v389, 0.0
  %v514 = vmax.f32 %v390, 0.0
  %v515 = vmax.f32 %v391, 0.0
  %v516 = vmax.f32 %v392, 0.0
  %v517 = vmax.f32 %v393, 0.0
  %v518 = vmax.f32 %v394, 0.0
  %v519 = vmax.f32 %v395, 0.0
  %v520 = vmax.f32 %v396, 0.0
  %v521 = vmax.f32 %v397, 0.0
  %v522 = vmax.f32 %v398, 0.0
  %v523 = vmax.f32 %v399, 0.0
  %v524 = vmax.f32 %v400, 0.0
  %v525 = vmax.f32 %v401, 0.0
  %v526 = vmax.f32 %v402, 0.0
  %v527 = vmax.f32 %v403, 0.0
  %v528 = vmax.f32 %v404, 0.0
  %v529 = vmax.f32 %v405, 0.0
  %v530 = vmax.f32 %v406, 0.0
  %v531 = vmax.f32 %v407, 0.0
  %v532 = vmax.f32 %v408, 0.0
  %v533 = vmax.f32 %v409, 0.0
  %v534 = vmax.f32 %v410, 0.0
  %v535 = vmax.f32 %v411, 0.0
  %v536 = vmax.f32 %v412, 0.0
  %v537 = vmax.f32 %v413, 0.0
  %v538 = vmax.f32 %v414, 0.0
  %v539 = vmax.f32 %v415, 0.0
  %v540 = vmax.f32 %v416, 0.0
  %v541 = vmax.f32 %v417, 0.0
  %v542 = vmax.f32 %v418, 0.0
  %v543 = vmax.f32 %v419, 0.0
  %v544 = vmax.f32 %v420, 0.0
  %v545 = vmax.f32 %v421, 0.0
  %v546 = vmax.f32 %v422, 0.0
  %v547 = vmax.f32 %v423, 0.0
  %v548 = vmax.f32 %v424, 0.0
  %v549 = vmax.f32 %v425, 0.0
  %v550 = vmax.f32 %v426, 0.0
  %v551 = vmax.f32 %v427, 0.0
  %v552 = vmax.f32 %v428, 0.0
  %v553 = vmax.f32 %v429, 0.0
  %v554 = vmax.f32 %v430, 0.0
  %v555 = vmax.f32 %v431, 0.0
  %v556 = vmax.f32 %v432, 0.0
  %v557 = vmax.f32 %v433, 0.0
  %v558 = vmax.f32 %v434, 0.0
  %v559 = vmax.f32 %v435, 0.0
  %v560 = vmax.f32 %v436, 0.0
  %v561 = vmax.f32 %v437, 0.0
  %v562 = vmax.f32 %v438, 0.0
  %v563 = vmax.f32 %v439, 0.0
  %v564 = vmax.f32 %v440, 0.0
  %v565 = vmax.f32 %v441, 0.0
  %v566 = vmax.f32 %v442, 0.0
  %v567 = vmax.f32 %v443, 0.0
  %v568 = vmax.f32 %v444, 0.0
  %v569 = vmax.f32 %v445, 0.0
  %v570 = vmax.f32 %v446, 0.0
  %v571 = vmax.f32 %v447, 0.0
  %v572 = vmax.f32 %v448, 0.0
  %v573 = vmax.f32 %v449, 0.0
  %v574 = vmax.f32 %v450, 0.0
  %v575 = vmax.f32 %v451, 0.0
  %v576 = vmax.f32 %v452, 0.0
  %v577 = vmax.f32 %v453, 0.0
  %v578 = vmax.f32 %v454, 0.0
  %v579 = vmax.f32 %v455, 0.0
  %v580 = vmax.f32 %v456, 0.0
  %v581 = vmax.f32 %v457, 0.0
  %v582 = vmax.f32 %v458, 0.0
  %v583 = vmax.f32 %v459, 0.0
  %v584 = vmax.f32 %v460, 0.0
  %v585 = vmax.f32 %v461, 0.0
  %v586 = vmax.f32 %v462, 0.0
  %v587 = vmax.f32 %v463, 0.0
  %v588 = vmax.f32 %v464, 0.0
  %v589 = vmax.f32 %v465, 0.0
  %v590 = vmax.f32 %v466, 0.0
  %v591 = vmax.f32 %v467, 0.0
  %v592 = vmax.f32 %v468, 0.0
  %v593 = vmax.f32 %v469, 0.0
  %v594 = vmax.f32 %v470, 0.0
  %v595 = vmax.f32 %v471, 0.0
  %v596 = vmax.f32 %v472, 0.0
  %v597 = vmax.f32 %v473, 0.0
  %v598 = vmax.f32 %v474, 0.0
  %v599 = vmax.f32 %v475, 0.0
  %v600 = vpack.c.bf16 %v478, %v476
  %v601 = vpack.c.bf16 %v479, %v477
  %v602 = vpack.c.bf16 %v482, %v480
  %v603 = vpack.c.bf16 %v483, %v481
  %v604 = vpack.c.bf16 %v486, %v484
  %v605 = vpack.c.bf16 %v487, %v485
  %v606 = vpack.c.bf16 %v490, %v488
  %v607 = vpack.c.bf16 %v491, %v489
  %v608 = vpack.c.bf16 %v494, %v492
  %v609 = vpack.c.bf16 %v495, %v493
  %v610 = vpack.c.bf16 %v498, %v496
  %v611 = vpack.c.bf16 %v499, %v497
  %v612 = vpack.c.bf16 %v502, %v500
  %v613 = vpack.c.bf16 %v503, %v501
  %v614 = vpack.c.bf16 %v506, %v504
  %v615 = vpack.c.bf16 %v507, %v505
  %v616 = vpack.c.bf16 %v510, %v508
  %v617 = vpack.c.bf16 %v511, %v509
  %v618 = vpack.c.bf16 %v514, %v512
  %v619 = vpack.c.bf16 %v515, %v513
  %v620 = vpack.c.bf16 %v518, %v516
  %v621 = vpack.c.bf16 %v519, %v517
  %v622 = vpack.c.bf16 %v522, %v520
  %v623 = vpack.c.bf16 %v523, %v521
  %v624 = vpack.c.bf16 %v526, %v524
  %v625 = vpack.c.bf16 %v527, %v525
  %v626 = vpack.c.bf16 %v530, %v528
  %v627 = vpack.c.bf16 %v531, %v529
  %v628 = vpack.c.bf16 %v534, %v532
  %v629 = vpack.c.bf16 %v535, %v533
  %v630 = vpack.c.bf16 %v538, %v536
  %v631 = vpack.c.bf16 %v539, %v537
  %v632 = vpack.c.bf16 %v542, %v540
  %v633 = vpack.c.bf16 %v543, %v541
  %v634 = vpack.c.bf16 %v546, %v544
  %v635 = vpack.c.bf16 %v547, %v545
  %v636 = vpack.c.bf16 %v550, %v548
  %v637 = vpack.c.bf16 %v551, %v549
  %v638 = vpack.c.bf16 %v554, %v552
  %v639 = vpack.c.bf16 %v555, %v553
  %v640 = vpack.c.bf16 %v558, %v556
  %v641 = vpack.c.bf16 %v559, %v557
  %v642 = vpack.c.bf16 %v562, %v560
  %v643 = vpack.c.bf16 %v563, %v561
  %v644 = vpack.c.bf16 %v566, %v564
  %v645 = vpack.c.bf16 %v567, %v565
  %v646 = vpack.c.bf16 %v570, %v568
  %v647 = vpack.c.bf16 %v571, %v569
  %v648 = vpack.c.bf16 %v574, %v572
  %v649 = vpack.c.bf16 %v575, %v573
  %v650 = vpack.c.bf16 %v578, %v576
  %v651 = vpack.c.bf16 %v579, %v577
  %v652 = vpack.c.bf16 %v582, %v580
  %v653 = vpack.c.bf16 %v583, %v581
  %v654 = vpack.c.bf16 %v586, %v584
  %v655 = vpack.c.bf16 %v587, %v585
  %v656 = vpack.c.bf16 %v590, %v588
  %v657 = vpack.c.bf16 %v591, %v589
  %v658 = vpack.c.bf16 %v594, %v592
  %v659 = vpack.c.bf16 %v595, %v593
  %v660 = vpack.c.bf16 %v598, %v596
  %v661 = vpack.c.bf16 %v599, %v597
  %v662 = vld [vmem:[%s3] sm:$0xf]
  %v663 = vld [vmem:[%s3 + $0x4] sm:$0xf]
  %v664 = vld [vmem:[%s3 + $0x8] sm:$0xf]
  %v665 = vld [vmem:[%s3 + $0xc] sm:$0xf]
  %v666 = vld [vmem:[%s3 + $0x10] sm:$0xf]
  %v667 = vld [vmem:[%s3 + $0x14] sm:$0xf]
  %v668 = vld [vmem:[%s3 + $0x18] sm:$0xf]
  %v669 = vld [vmem:[%s3 + $0x1c] sm:$0xf]
  %v670 = vld [vmem:[%s3 + $0x20] sm:$0xf]
  %v671 = vld [vmem:[%s3 + $0x24] sm:$0xf]
  %v672 = vld [vmem:[%s3 + $0x28] sm:$0xf]
  %v673 = vld [vmem:[%s3 + $0x2c] sm:$0xf]
  %v674 = vld [vmem:[%s3 + $0x30] sm:$0xf]
  %v675 = vld [vmem:[%s3 + $0x34] sm:$0xf]
  %v676 = vld [vmem:[%s3 + $0x38] sm:$0xf]
  %v677 = vld [vmem:[%s3 + $0x3c] sm:$0xf]
  %v678 = vld [vmem:[%s3 + $0x40] sm:$0xf]
  %v679 = vld [vmem:[%s3 + $0x44] sm:$0xf]
  %v680 = vld [vmem:[%s3 + $0x48] sm:$0xf]
  %v681 = vld [vmem:[%s3 + $0x4c] sm:$0xf]
  %v682 = vld [vmem:[%s3 + $0x50] sm:$0xf]
  %v683 = vld [vmem:[%s3 + $0x54] sm:$0xf]
  %v684 = vld [vmem:[%s3 + $0x58] sm:$0xf]
  %v685 = vld [vmem:[%s3 + $0x5c] sm:$0xf]
  %v686 = vld [vmem:[%s3 + $0x60] sm:$0xf]
  %v687 = vld [vmem:[%s3 + $0x64] sm:$0xf]
  %v688 = vld [vmem:[%s3 + $0x68] sm:$0xf]
  %v716 = vunpack.c.l.b16 %v662
  %v717 = vunpack.c.l.b16 %v663
  %v718 = vunpack.c.l.b16 %v664
  %v719 = vunpack.c.l.b16 %v665
  %v720 = vunpack.c.l.b16 %v666
  %v721 = vunpack.c.l.b16 %v667
  %v722 = vunpack.c.l.b16 %v668
  %v723 = vunpack.c.l.b16 %v669
  %v724 = vunpack.c.l.b16 %v670
  %v725 = vunpack.c.l.b16 %v671
  %v726 = vunpack.c.l.b16 %v672
  %v727 = vunpack.c.l.b16 %v673
  %v728 = vunpack.c.l.b16 %v674
  %v729 = vunpack.c.l.b16 %v675
  %v730 = vunpack.c.l.b16 %v676
  %v731 = vunpack.c.l.b16 %v677
  %v732 = vunpack.c.l.b16 %v678
  %v733 = vunpack.c.l.b16 %v679
  %v734 = vunpack.c.l.b16 %v680
  %v735 = vunpack.c.l.b16 %v681
  %v736 = vunpack.c.l.b16 %v682
  %v737 = vunpack.c.l.b16 %v683
  %v738 = vunpack.c.l.b16 %v684
  %v739 = vunpack.c.l.b16 %v685
  %v740 = vunpack.c.l.b16 %v686
  %v741 = vunpack.c.l.b16 %v687
  %v742 = vunpack.c.l.b16 %v688
  %v743 = vpack.c.b16 %v717, %v716
  %v744 = vpack.c.b16 %v719, %v718
  %v745 = vpack.c.b16 %v721, %v720
  %v746 = vpack.c.b16 %v723, %v722
  %v747 = vpack.c.b16 %v725, %v724
  %v748 = vpack.c.b16 %v727, %v726
  %v749 = vpack.c.b16 %v729, %v728
  %v750 = vpack.c.b16 %v731, %v730
  %v751 = vpack.c.b16 %v733, %v732
  %v752 = vpack.c.b16 %v735, %v734
  %v753 = vpack.c.b16 %v737, %v736
  %v754 = vpack.c.b16 %v739, %v738
  %v755 = vpack.c.b16 %v741, %v740
  %v756 = vpack.c.b16 %v742, %v742
  %vm770 = vcmask 719872
  %v772 = vsel %vm770, %v601, 0
  %v775 = vsel %vm770, %v603, 0
  %v778 = vsel %vm770, %v605, 0
  %v781 = vsel %vm770, %v607, 0
  %v784 = vsel %vm770, %v609, 0
  %v787 = vsel %vm770, %v611, 0
  %v790 = vsel %vm770, %v613, 0
  %v793 = vsel %vm770, %v615, 0
  %v796 = vsel %vm770, %v617, 0
  %v799 = vsel %vm770, %v619, 0
  %v802 = vsel %vm770, %v621, 0
  %v805 = vsel %vm770, %v623, 0
  %v808 = vsel %vm770, %v625, 0
  %v811 = vsel %vm770, %v627, 0
  %v814 = vsel %vm770, %v629, 0
  %v817 = vsel %vm770, %v631, 0
  %v820 = vsel %vm770, %v633, 0
  %v823 = vsel %vm770, %v635, 0
  %v826 = vsel %vm770, %v637, 0
  %v829 = vsel %vm770, %v639, 0
  %v832 = vsel %vm770, %v641, 0
  %v835 = vsel %vm770, %v643, 0
  %v838 = vsel %vm770, %v645, 0
  %v841 = vsel %vm770, %v647, 0
  %v844 = vsel %vm770, %v649, 0
  %v847 = vsel %vm770, %v651, 0
  %v850 = vsel %vm770, %v653, 0
  %v853 = vsel %vm770, %v655, 0
  %v856 = vsel %vm770, %v657, 0
  %v859 = vsel %vm770, %v659, 0
  %v862 = vsel %vm770, %v661, 0
  %vm864 = vcmask 1043456
  %v866 = vsel %vm864, %v756, 0
  %868 = vmatprep.subr.bf16.mxu0 0
  %869 = vmatpush1.bf16.msra.mxu0 %v743
  %870 = vmatprep.subr.bf16.mxu0 0
  %871 = vmatpush1.bf16.msra.mxu0 %v744
  %872 = vmatprep.subr.bf16.mxu0 0
  %873 = vmatpush1.bf16.msra.mxu0 %v745
  %874 = vmatprep.subr.bf16.mxu0 0
  %875 = vmatpush1.bf16.msra.mxu0 %v746
  %876 = vmatprep.subr.bf16.mxu0 0
  %877 = vmatpush1.bf16.msra.mxu0 %v747
  %878 = vmatprep.subr.bf16.mxu0 0
  %879 = vmatpush1.bf16.msra.mxu0 %v748
  %880 = vmatprep.subr.bf16.mxu0 0
  %881 = vmatpush1.bf16.msra.mxu0 %v749
  %882 = vmatprep.subr.bf16.mxu0 0
  %883 = vmatpush1.bf16.msra.mxu0 %v750
  %884 = vmatprep.subr.bf16.mxu0 0
  %885 = vmatpush1.bf16.msra.mxu0 %v751
  %886 = vmatprep.subr.bf16.mxu0 0
  %887 = vmatpush1.bf16.msra.mxu0 %v752
  %888 = vmatprep.subr.bf16.mxu0 0
  %889 = vmatpush1.bf16.msra.mxu0 %v753
  %890 = vmatprep.subr.bf16.mxu0 0
  %891 = vmatpush1.bf16.msra.mxu0 %v754
  %892 = vmatprep.subr.bf16.mxu0 0
  %893 = vmatpush1.bf16.msra.mxu0 %v755
  %894 = vmatprep.subr.bf16.mxu0 0
  %895 = vmatpush1.bf16.msra.mxu0 %v866
  %896 = vmatprep.subr.bf16.mxu0 0
  %897 = vmatpush1.bf16.msra.mxu0 0
  %898 = vmatprep.subr.bf16.mxu0 0
  %899 = vmatpush1.bf16.msra.mxu0 0
  %900 = vmatprep.mubr.bf16.mxu0 %v772
  %901 = vmatmul.mubr.bf16.gmra.mrb[0].mxu0 %v600
  %v902 = vpop.f32.mrb[0].mxu0
  %v903 = vadd.f32 0.0, %v902
  %v904 = vpop.f32.mrb[0].mxu0
  %v905 = vpop.f32.mrb[0].mxu0
  %v906 = vadd.f32 0.0, %v905
  %v907 = vpop.f32.mrb[0].mxu0
  %908 = vmatprep.mubr.bf16.mxu0 %v775
  %909 = vmatmul.mubr.bf16.gmra.mrb[0].mxu0 %v602
  %v910 = vpop.f32.mrb[0].mxu0
  %v911 = vadd.f32 0.0, %v910
  %v912 = vpop.f32.mrb[0].mxu0
  %v913 = vpop.f32.mrb[0].mxu0
  %v914 = vadd.f32 0.0, %v913
  %v915 = vpop.f32.mrb[0].mxu0
  %916 = vmatprep.mubr.bf16.mxu0 %v778
  %917 = vmatmul.mubr.bf16.gmra.mrb[0].mxu0 %v604
  %v918 = vpop.f32.mrb[0].mxu0
  %v919 = vadd.f32 0.0, %v918
  %v920 = vpop.f32.mrb[0].mxu0
  %v921 = vpop.f32.mrb[0].mxu0
  %v922 = vadd.f32 0.0, %v921
  %v923 = vpop.f32.mrb[0].mxu0
  %924 = vmatprep.mubr.bf16.mxu0 %v781
  %925 = vmatmul.mubr.bf16.gmra.mrb[0].mxu0 %v606
  %v926 = vpop.f32.mrb[0].mxu0
  %v927 = vadd.f32 0.0, %v926
  %v928 = vpop.f32.mrb[0].mxu0
  %v929 = vpop.f32.mrb[0].mxu0
  %v930 = vadd.f32 0.0, %v929
  %v931 = vpop.f32.mrb[0].mxu0
  %932 = vmatprep.mubr.bf16.mxu0 %v784
  %933 = vmatmul.mubr.bf16.gmra.mrb[0].mxu0 %v608
  %v934 = vpop.f32.mrb[0].mxu0
  %v935 = vadd.f32 0.0, %v934
  %v936 = vpop.f32.mrb[0].mxu0
  %v937 = vpop.f32.mrb[0].mxu0
  %v938 = vadd.f32 0.0, %v937
  %v939 = vpop.f32.mrb[0].mxu0
  %940 = vmatprep.mubr.bf16.mxu0 %v787
  %941 = vmatmul.mubr.bf16.gmra.mrb[0].mxu0 %v610
  %v942 = vpop.f32.mrb[0].mxu0
  %v943 = vadd.f32 0.0, %v942
  %v944 = vpop.f32.mrb[0].mxu0
  %v945 = vpop.f32.mrb[0].mxu0
  %v946 = vadd.f32 0.0, %v945
  %v947 = vpop.f32.mrb[0].mxu0
  %948 = vmatprep.mubr.bf16.mxu0 %v790
  %949 = vmatmul.mubr.bf16.gmra.mrb[0].mxu0 %v612
  %v950 = vpop.f32.mrb[0].mxu0
  %v951 = vadd.f32 0.0, %v950
  %v952 = vpop.f32.mrb[0].mxu0
  %v953 = vpop.f32.mrb[0].mxu0
  %v954 = vadd.f32 0.0, %v953
  %v955 = vpop.f32.mrb[0].mxu0
  %956 = vmatprep.mubr.bf16.mxu0 %v793
  %957 = vmatmul.mubr.bf16.gmra.mrb[0].mxu0 %v614
  %v958 = vpop.f32.mrb[0].mxu0
  %v959 = vadd.f32 0.0, %v958
  %v960 = vpop.f32.mrb[0].mxu0
  %v961 = vpop.f32.mrb[0].mxu0
  %v962 = vadd.f32 0.0, %v961
  %v963 = vpop.f32.mrb[0].mxu0
  %964 = vmatprep.mubr.bf16.mxu0 %v796
  %965 = vmatmul.mubr.bf16.gmra.mrb[0].mxu0 %v616
  %v966 = vpop.f32.mrb[0].mxu0
  %v967 = vadd.f32 0.0, %v966
  %v968 = vpop.f32.mrb[0].mxu0
  %v969 = vpop.f32.mrb[0].mxu0
  %v970 = vadd.f32 0.0, %v969
  %v971 = vpop.f32.mrb[0].mxu0
  %972 = vmatprep.mubr.bf16.mxu0 %v799
  %973 = vmatmul.mubr.bf16.gmra.mrb[0].mxu0 %v618
  %v974 = vpop.f32.mrb[0].mxu0
  %v975 = vadd.f32 0.0, %v974
  %v976 = vpop.f32.mrb[0].mxu0
  %v977 = vpop.f32.mrb[0].mxu0
  %v978 = vadd.f32 0.0, %v977
  %v979 = vpop.f32.mrb[0].mxu0
  %980 = vmatprep.mubr.bf16.mxu0 %v802
  %981 = vmatmul.mubr.bf16.gmra.mrb[0].mxu0 %v620
  %v982 = vpop.f32.mrb[0].mxu0
  %v983 = vadd.f32 0.0, %v982
  %v984 = vpop.f32.mrb[0].mxu0
  %v985 = vpop.f32.mrb[0].mxu0
  %v986 = vadd.f32 0.0, %v985
  %v987 = vpop.f32.mrb[0].mxu0
  %988 = vmatprep.mubr.bf16.mxu0 %v805
  %989 = vmatmul.mubr.bf16.gmra.mrb[0].mxu0 %v622
  %v990 = vpop.f32.mrb[0].mxu0
  %v991 = vadd.f32 0.0, %v990
  %v992 = vpop.f32.mrb[0].mxu0
  %v993 = vpop.f32.mrb[0].mxu0
  %v994 = vadd.f32 0.0, %v993
  %v995 = vpop.f32.mrb[0].mxu0
  %996 = vmatprep.mubr.bf16.mxu0 %v808
  %997 = vmatmul.mubr.bf16.gmra.mrb[0].mxu0 %v624
  %v998 = vpop.f32.mrb[0].mxu0
  %v999 = vadd.f32 0.0, %v998
  %v1000 = vpop.f32.mrb[0].mxu0
  %v1001 = vpop.f32.mrb[0].mxu0
  %v1002 = vadd.f32 0.0, %v1001
  %v1003 = vpop.f32.mrb[0].mxu0
  %1004 = vmatprep.mubr.bf16.mxu0 %v811
  %1005 = vmatmul.mubr.bf16.gmra.mrb[0].mxu0 %v626
  %v1006 = vpop.f32.mrb[0].mxu0
  %v1007 = vadd.f32 0.0, %v1006
  %v1008 = vpop.f32.mrb[0].mxu0
  %v1009 = vpop.f32.mrb[0].mxu0
  %v1010 = vadd.f32 0.0, %v1009
  %v1011 = vpop.f32.mrb[0].mxu0
  %1012 = vmatprep.mubr.bf16.mxu0 %v814
  %1013 = vmatmul.mubr.bf16.gmra.mrb[0].mxu0 %v628
  %v1014 = vpop.f32.mrb[0].mxu0
  %v1015 = vadd.f32 0.0, %v1014
  %v1016 = vpop.f32.mrb[0].mxu0
  %v1017 = vpop.f32.mrb[0].mxu0
  %v1018 = vadd.f32 0.0, %v1017
  %v1019 = vpop.f32.mrb[0].mxu0
  %1020 = vmatprep.mubr.bf16.mxu0 %v817
  %1021 = vmatmul.mubr.bf16.gmra.mrb[0].mxu0 %v630
  %v1022 = vpop.f32.mrb[0].mxu0
  %v1023 = vadd.f32 0.0, %v1022
  %v1024 = vpop.f32.mrb[0].mxu0
  %v1025 = vpop.f32.mrb[0].mxu0
  %v1026 = vadd.f32 0.0, %v1025
  %v1027 = vpop.f32.mrb[0].mxu0
  %1028 = vmatprep.mubr.bf16.mxu0 %v820
  %1029 = vmatmul.mubr.bf16.gmra.mrb[0].mxu0 %v632
  %v1030 = vpop.f32.mrb[0].mxu0
  %v1031 = vadd.f32 0.0, %v1030
  %v1032 = vpop.f32.mrb[0].mxu0
  %v1033 = vpop.f32.mrb[0].mxu0
  %v1034 = vadd.f32 0.0, %v1033
  %v1035 = vpop.f32.mrb[0].mxu0
  %1036 = vmatprep.mubr.bf16.mxu0 %v823
  %1037 = vmatmul.mubr.bf16.gmra.mrb[0].mxu0 %v634
  %v1038 = vpop.f32.mrb[0].mxu0
  %v1039 = vadd.f32 0.0, %v1038
  %v1040 = vpop.f32.mrb[0].mxu0
  %v1041 = vpop.f32.mrb[0].mxu0
  %v1042 = vadd.f32 0.0, %v1041
  %v1043 = vpop.f32.mrb[0].mxu0
  %1044 = vmatprep.mubr.bf16.mxu0 %v826
  %1045 = vmatmul.mubr.bf16.gmra.mrb[0].mxu0 %v636
  %v1046 = vpop.f32.mrb[0].mxu0
  %v1047 = vadd.f32 0.0, %v1046
  %v1048 = vpop.f32.mrb[0].mxu0
  %v1049 = vpop.f32.mrb[0].mxu0
  %v1050 = vadd.f32 0.0, %v1049
  %v1051 = vpop.f32.mrb[0].mxu0
  %1052 = vmatprep.mubr.bf16.mxu0 %v829
  %1053 = vmatmul.mubr.bf16.gmra.mrb[0].mxu0 %v638
  %v1054 = vpop.f32.mrb[0].mxu0
  %v1055 = vadd.f32 0.0, %v1054
  %v1056 = vpop.f32.mrb[0].mxu0
  %v1057 = vpop.f32.mrb[0].mxu0
  %v1058 = vadd.f32 0.0, %v1057
  %v1059 = vpop.f32.mrb[0].mxu0
  %1060 = vmatprep.mubr.bf16.mxu0 %v832
  %1061 = vmatmul.mubr.bf16.gmra.mrb[0].mxu0 %v640
  %v1062 = vpop.f32.mrb[0].mxu0
  %v1063 = vadd.f32 0.0, %v1062
  %v1064 = vpop.f32.mrb[0].mxu0
  %v1065 = vpop.f32.mrb[0].mxu0
  %v1066 = vadd.f32 0.0, %v1065
  %v1067 = vpop.f32.mrb[0].mxu0
  %1068 = vmatprep.mubr.bf16.mxu0 %v835
  %1069 = vmatmul.mubr.bf16.gmra.mrb[0].mxu0 %v642
  %v1070 = vpop.f32.mrb[0].mxu0
  %v1071 = vadd.f32 0.0, %v1070
  %v1072 = vpop.f32.mrb[0].mxu0
  %v1073 = vpop.f32.mrb[0].mxu0
  %v1074 = vadd.f32 0.0, %v1073
  %v1075 = vpop.f32.mrb[0].mxu0
  %1076 = vmatprep.mubr.bf16.mxu0 %v838
  %1077 = vmatmul.mubr.bf16.gmra.mrb[0].mxu0 %v644
  %v1078 = vpop.f32.mrb[0].mxu0
  %v1079 = vadd.f32 0.0, %v1078
  %v1080 = vpop.f32.mrb[0].mxu0
  %v1081 = vpop.f32.mrb[0].mxu0
  %v1082 = vadd.f32 0.0, %v1081
  %v1083 = vpop.f32.mrb[0].mxu0
  %1084 = vmatprep.mubr.bf16.mxu0 %v841
  %1085 = vmatmul.mubr.bf16.gmra.mrb[0].mxu0 %v646
  %v1086 = vpop.f32.mrb[0].mxu0
  %v1087 = vadd.f32 0.0, %v1086
  %v1088 = vpop.f32.mrb[0].mxu0
  %v1089 = vpop.f32.mrb[0].mxu0
  %v1090 = vadd.f32 0.0, %v1089
  %v1091 = vpop.f32.mrb[0].mxu0
  %1092 = vmatprep.mubr.bf16.mxu0 %v844
  %1093 = vmatmul.mubr.bf16.gmra.mrb[0].mxu0 %v648
  %v1094 = vpop.f32.mrb[0].mxu0
  %v1095 = vadd.f32 0.0, %v1094
  %v1096 = vpop.f32.mrb[0].mxu0
  %v1097 = vpop.f32.mrb[0].mxu0
  %v1098 = vadd.f32 0.0, %v1097
  %v1099 = vpop.f32.mrb[0].mxu0
  %1100 = vmatprep.mubr.bf16.mxu0 %v847
  %1101 = vmatmul.mubr.bf16.gmra.mrb[0].mxu0 %v650
  %v1102 = vpop.f32.mrb[0].mxu0
  %v1103 = vadd.f32 0.0, %v1102
  %v1104 = vpop.f32.mrb[0].mxu0
  %v1105 = vpop.f32.mrb[0].mxu0
  %v1106 = vadd.f32 0.0, %v1105
  %v1107 = vpop.f32.mrb[0].mxu0
  %1108 = vmatprep.mubr.bf16.mxu0 %v850
  %1109 = vmatmul.mubr.bf16.gmra.mrb[0].mxu0 %v652
  %v1110 = vpop.f32.mrb[0].mxu0
  %v1111 = vadd.f32 0.0, %v1110
  %v1112 = vpop.f32.mrb[0].mxu0
  %v1113 = vpop.f32.mrb[0].mxu0
  %v1114 = vadd.f32 0.0, %v1113
  %v1115 = vpop.f32.mrb[0].mxu0
  %1116 = vmatprep.mubr.bf16.mxu0 %v853
  %1117 = vmatmul.mubr.bf16.gmra.mrb[0].mxu0 %v654
  %v1118 = vpop.f32.mrb[0].mxu0
  %v1119 = vadd.f32 0.0, %v1118
  %v1120 = vpop.f32.mrb[0].mxu0
  %v1121 = vpop.f32.mrb[0].mxu0
  %v1122 = vadd.f32 0.0, %v1121
  %v1123 = vpop.f32.mrb[0].mxu0
  %1124 = vmatprep.mubr.bf16.mxu0 %v856
  %1125 = vmatmul.mubr.bf16.gmra.mrb[0].mxu0 %v656
  %v1126 = vpop.f32.mrb[0].mxu0
  %v1127 = vadd.f32 0.0, %v1126
  %v1128 = vpop.f32.mrb[0].mxu0
  %v1129 = vpop.f32.mrb[0].mxu0
  %v1130 = vadd.f32 0.0, %v1129
  %v1131 = vpop.f32.mrb[0].mxu0
  %1132 = vmatprep.mubr.bf16.mxu0 %v859
  %1133 = vmatmul.mubr.bf16.gmra.mrb[0].mxu0 %v658
  %v1134 = vpop.f32.mrb[0].mxu0
  %v1135 = vadd.f32 0.0, %v1134
  %v1136 = vpop.f32.mrb[0].mxu0
  %v1137 = vpop.f32.mrb[0].mxu0
  %v1138 = vadd.f32 0.0, %v1137
  %v1139 = vpop.f32.mrb[0].mxu0
  %1140 = vmatprep.mubr.bf16.mxu0 %v862
  %1141 = vmatmul.mubr.bf16.gmra.mrb[0].mxu0 %v660
  %v1142 = vpop.f32.mrb[0].mxu0
  %v1143 = vadd.f32 0.0, %v1142
  %v1144 = vpop.f32.mrb[0].mxu0
  %v1145 = vpop.f32.mrb[0].mxu0
  %v1146 = vadd.f32 0.0, %v1145
  %v1147 = vpop.f32.mrb[0].mxu0
  %1148 = vdwg.mxu0
  %v1149 = vpack.c.bf16 %v906, %v903
  %v1150 = vpack.c.bf16 %v914, %v911
  %v1151 = vpack.c.bf16 %v922, %v919
  %v1152 = vpack.c.bf16 %v930, %v927
  %v1153 = vpack.c.bf16 %v938, %v935
  %v1154 = vpack.c.bf16 %v946, %v943
  %v1155 = vpack.c.bf16 %v954, %v951
  %v1156 = vpack.c.bf16 %v962, %v959
  %v1157 = vpack.c.bf16 %v970, %v967
  %v1158 = vpack.c.bf16 %v978, %v975
  %v1159 = vpack.c.bf16 %v986, %v983
  %v1160 = vpack.c.bf16 %v994, %v991
  %v1161 = vpack.c.bf16 %v1002, %v999
  %v1162 = vpack.c.bf16 %v1010, %v1007
  %v1163 = vpack.c.bf16 %v1018, %v1015
  %v1164 = vpack.c.bf16 %v1026, %v1023
  %v1165 = vpack.c.bf16 %v1034, %v1031
  %v1166 = vpack.c.bf16 %v1042, %v1039
  %v1167 = vpack.c.bf16 %v1050, %v1047
  %v1168 = vpack.c.bf16 %v1058, %v1055
  %v1169 = vpack.c.bf16 %v1066, %v1063
  %v1170 = vpack.c.bf16 %v1074, %v1071
  %v1171 = vpack.c.bf16 %v1082, %v1079
  %v1172 = vpack.c.bf16 %v1090, %v1087
  %v1173 = vpack.c.bf16 %v1098, %v1095
  %v1174 = vpack.c.bf16 %v1106, %v1103
  %v1175 = vpack.c.bf16 %v1114, %v1111
  %v1176 = vpack.c.bf16 %v1122, %v1119
  %v1177 = vpack.c.bf16 %v1130, %v1127
  %v1178 = vpack.c.bf16 %v1138, %v1135
  %v1179 = vpack.c.bf16 %v1146, %v1143
  %v1211 = vunpack.c.l.b16 %v1149
  %v1212 = vunpack.c.h.b16 %v1149
  %v1213 = vunpack.c.l.b16 %v1150
  %v1214 = vunpack.c.h.b16 %v1150
  %v1215 = vunpack.c.l.b16 %v1151
  %v1216 = vunpack.c.h.b16 %v1151
  %v1217 = vunpack.c.l.b16 %v1152
  %v1218 = vunpack.c.h.b16 %v1152
  %v1219 = vunpack.c.l.b16 %v1153
  %v1220 = vunpack.c.h.b16 %v1153
  %v1221 = vunpack.c.l.b16 %v1154
  %v1222 = vunpack.c.h.b16 %v1154
  %v1223 = vunpack.c.l.b16 %v1155
  %v1224 = vunpack.c.h.b16 %v1155
  %v1225 = vunpack.c.l.b16 %v1156
  %v1226 = vunpack.c.h.b16 %v1156
  %v1227 = vunpack.c.l.b16 %v1157
  %v1228 = vunpack.c.h.b16 %v1157
  %v1229 = vunpack.c.l.b16 %v1158
  %v1230 = vunpack.c.h.b16 %v1158
  %v1231 = vunpack.c.l.b16 %v1159
  %v1232 = vunpack.c.h.b16 %v1159
  %v1233 = vunpack.c.l.b16 %v1160
  %v1234 = vunpack.c.h.b16 %v1160
  %v1235 = vunpack.c.l.b16 %v1161
  %v1236 = vunpack.c.h.b16 %v1161
  %v1237 = vunpack.c.l.b16 %v1162
  %v1238 = vunpack.c.h.b16 %v1162
  %v1239 = vunpack.c.l.b16 %v1163
  %v1240 = vunpack.c.h.b16 %v1163
  %v1241 = vunpack.c.l.b16 %v1164
  %v1242 = vunpack.c.h.b16 %v1164
  %v1243 = vunpack.c.l.b16 %v1165
  %v1244 = vunpack.c.h.b16 %v1165
  %v1245 = vunpack.c.l.b16 %v1166
  %v1246 = vunpack.c.h.b16 %v1166
  %v1247 = vunpack.c.l.b16 %v1167
  %v1248 = vunpack.c.h.b16 %v1167
  %v1249 = vunpack.c.l.b16 %v1168
  %v1250 = vunpack.c.h.b16 %v1168
  %v1251 = vunpack.c.l.b16 %v1169
  %v1252 = vunpack.c.h.b16 %v1169
  %v1253 = vunpack.c.l.b16 %v1170
  %v1254 = vunpack.c.h.b16 %v1170
  %v1255 = vunpack.c.l.b16 %v1171
  %v1256 = vunpack.c.h.b16 %v1171
  %v1257 = vunpack.c.l.b16 %v1172
  %v1258 = vunpack.c.h.b16 %v1172
  %v1259 = vunpack.c.l.b16 %v1173
  %v1260 = vunpack.c.h.b16 %v1173
  %v1261 = vunpack.c.l.b16 %v1174
  %v1262 = vunpack.c.h.b16 %v1174
  %v1263 = vunpack.c.l.b16 %v1175
  %v1264 = vunpack.c.h.b16 %v1175
  %v1265 = vunpack.c.l.b16 %v1176
  %v1266 = vunpack.c.h.b16 %v1176
  %v1267 = vunpack.c.l.b16 %v1177
  %v1268 = vunpack.c.h.b16 %v1177
  %v1269 = vunpack.c.l.b16 %v1178
  %v1270 = vunpack.c.h.b16 %v1178
  %v1271 = vunpack.c.l.b16 %v1179
  %v1272 = vunpack.c.h.b16 %v1179
  %v1273 = vpack.c.b16 %v1211, %v1211
  %v1274 = vpack.c.b16 %v1212, %v1212
  %v1275 = vpack.c.b16 %v1213, %v1213
  %v1276 = vpack.c.b16 %v1214, %v1214
  %v1277 = vpack.c.b16 %v1215, %v1215
  %v1278 = vpack.c.b16 %v1216, %v1216
  %v1279 = vpack.c.b16 %v1217, %v1217
  %v1280 = vpack.c.b16 %v1218, %v1218
  %v1281 = vpack.c.b16 %v1219, %v1219
  %v1282 = vpack.c.b16 %v1220, %v1220
  %v1283 = vpack.c.b16 %v1221, %v1221
  %v1284 = vpack.c.b16 %v1222, %v1222
  %v1285 = vpack.c.b16 %v1223, %v1223
  %v1286 = vpack.c.b16 %v1224, %v1224
  %v1287 = vpack.c.b16 %v1225, %v1225
  %v1288 = vpack.c.b16 %v1226, %v1226
  %v1289 = vpack.c.b16 %v1227, %v1227
  %v1290 = vpack.c.b16 %v1228, %v1228
  %v1291 = vpack.c.b16 %v1229, %v1229
  %v1292 = vpack.c.b16 %v1230, %v1230
  %v1293 = vpack.c.b16 %v1231, %v1231
  %v1294 = vpack.c.b16 %v1232, %v1232
  %v1295 = vpack.c.b16 %v1233, %v1233
  %v1296 = vpack.c.b16 %v1234, %v1234
  %v1297 = vpack.c.b16 %v1235, %v1235
  %v1298 = vpack.c.b16 %v1236, %v1236
  %v1299 = vpack.c.b16 %v1237, %v1237
  %v1300 = vpack.c.b16 %v1238, %v1238
  %v1301 = vpack.c.b16 %v1239, %v1239
  %v1302 = vpack.c.b16 %v1240, %v1240
  %v1303 = vpack.c.b16 %v1241, %v1241
  %v1304 = vpack.c.b16 %v1242, %v1242
  %v1305 = vpack.c.b16 %v1243, %v1243
  %v1306 = vpack.c.b16 %v1244, %v1244
  %v1307 = vpack.c.b16 %v1245, %v1245
  %v1308 = vpack.c.b16 %v1246, %v1246
  %v1309 = vpack.c.b16 %v1247, %v1247
  %v1310 = vpack.c.b16 %v1248, %v1248
  %v1311 = vpack.c.b16 %v1249, %v1249
  %v1312 = vpack.c.b16 %v1250, %v1250
  %v1313 = vpack.c.b16 %v1251, %v1251
  %v1314 = vpack.c.b16 %v1252, %v1252
  %v1315 = vpack.c.b16 %v1253, %v1253
  %v1316 = vpack.c.b16 %v1254, %v1254
  %v1317 = vpack.c.b16 %v1255, %v1255
  %v1318 = vpack.c.b16 %v1256, %v1256
  %v1319 = vpack.c.b16 %v1257, %v1257
  %v1320 = vpack.c.b16 %v1258, %v1258
  %v1321 = vpack.c.b16 %v1259, %v1259
  %v1322 = vpack.c.b16 %v1260, %v1260
  %v1323 = vpack.c.b16 %v1261, %v1261
  %v1324 = vpack.c.b16 %v1262, %v1262
  %v1325 = vpack.c.b16 %v1263, %v1263
  %v1326 = vpack.c.b16 %v1264, %v1264
  %v1327 = vpack.c.b16 %v1265, %v1265
  %v1328 = vpack.c.b16 %v1266, %v1266
  %v1329 = vpack.c.b16 %v1267, %v1267
  %v1330 = vpack.c.b16 %v1268, %v1268
  %v1331 = vpack.c.b16 %v1269, %v1269
  %v1332 = vpack.c.b16 %v1270, %v1270
  %v1333 = vpack.c.b16 %v1271, %v1271
  %v1334 = vpack.c.b16 %v1272, %v1272
  %vm1397 = vcmask 60416
  %1398 = vst.msk [vmem:[%s4] sm:$0xf] %vm1397, %v1273
  %1399 = vst.msk [vmem:[%s4 + $0x4] sm:$0xf] %vm1397, %v1274
  %1400 = vst.msk [vmem:[%s4 + $0x8] sm:$0xf] %vm1397, %v1275
  %1401 = vst.msk [vmem:[%s4 + $0xc] sm:$0xf] %vm1397, %v1276
  %1402 = vst.msk [vmem:[%s4 + $0x10] sm:$0xf] %vm1397, %v1277
  %1403 = vst.msk [vmem:[%s4 + $0x14] sm:$0xf] %vm1397, %v1278
  %1404 = vst.msk [vmem:[%s4 + $0x18] sm:$0xf] %vm1397, %v1279
  %1405 = vst.msk [vmem:[%s4 + $0x1c] sm:$0xf] %vm1397, %v1280
  %1406 = vst.msk [vmem:[%s4 + $0x20] sm:$0xf] %vm1397, %v1281
  %1407 = vst.msk [vmem:[%s4 + $0x24] sm:$0xf] %vm1397, %v1282
  %1408 = vst.msk [vmem:[%s4 + $0x28] sm:$0xf] %vm1397, %v1283
  %1409 = vst.msk [vmem:[%s4 + $0x2c] sm:$0xf] %vm1397, %v1284
  %1410 = vst.msk [vmem:[%s4 + $0x30] sm:$0xf] %vm1397, %v1285
  %1411 = vst.msk [vmem:[%s4 + $0x34] sm:$0xf] %vm1397, %v1286
  %1412 = vst.msk [vmem:[%s4 + $0x38] sm:$0xf] %vm1397, %v1287
  %1413 = vst.msk [vmem:[%s4 + $0x3c] sm:$0xf] %vm1397, %v1288
  %1414 = vst.msk [vmem:[%s4 + $0x40] sm:$0xf] %vm1397, %v1289
  %1415 = vst.msk [vmem:[%s4 + $0x44] sm:$0xf] %vm1397, %v1290
  %1416 = vst.msk [vmem:[%s4 + $0x48] sm:$0xf] %vm1397, %v1291
  %1417 = vst.msk [vmem:[%s4 + $0x4c] sm:$0xf] %vm1397, %v1292
  %1418 = vst.msk [vmem:[%s4 + $0x50] sm:$0xf] %vm1397, %v1293
  %1419 = vst.msk [vmem:[%s4 + $0x54] sm:$0xf] %vm1397, %v1294
  %1420 = vst.msk [vmem:[%s4 + $0x58] sm:$0xf] %vm1397, %v1295
  %1421 = vst.msk [vmem:[%s4 + $0x5c] sm:$0xf] %vm1397, %v1296
  %1422 = vst.msk [vmem:[%s4 + $0x60] sm:$0xf] %vm1397, %v1297
  %1423 = vst.msk [vmem:[%s4 + $0x64] sm:$0xf] %vm1397, %v1298
  %1424 = vst.msk [vmem:[%s4 + $0x68] sm:$0xf] %vm1397, %v1299
  %1425 = vst.msk [vmem:[%s4 + $0x6c] sm:$0xf] %vm1397, %v1300
  %1426 = vst.msk [vmem:[%s4 + $0x70] sm:$0xf] %vm1397, %v1301
  %1427 = vst.msk [vmem:[%s4 + $0x74] sm:$0xf] %vm1397, %v1302
  %1428 = vst.msk [vmem:[%s4 + $0x78] sm:$0xf] %vm1397, %v1303
  %1429 = vst.msk [vmem:[%s4 + $0x7c] sm:$0xf] %vm1397, %v1304
  %1430 = vst.msk [vmem:[%s4 + $0x80] sm:$0xf] %vm1397, %v1305
  %1431 = vst.msk [vmem:[%s4 + $0x84] sm:$0xf] %vm1397, %v1306
  %1432 = vst.msk [vmem:[%s4 + $0x88] sm:$0xf] %vm1397, %v1307
  %1433 = vst.msk [vmem:[%s4 + $0x8c] sm:$0xf] %vm1397, %v1308
  %1434 = vst.msk [vmem:[%s4 + $0x90] sm:$0xf] %vm1397, %v1309
  %1435 = vst.msk [vmem:[%s4 + $0x94] sm:$0xf] %vm1397, %v1310
  %1436 = vst.msk [vmem:[%s4 + $0x98] sm:$0xf] %vm1397, %v1311
  %1437 = vst.msk [vmem:[%s4 + $0x9c] sm:$0xf] %vm1397, %v1312
  %1438 = vst.msk [vmem:[%s4 + $0xa0] sm:$0xf] %vm1397, %v1313
  %1439 = vst.msk [vmem:[%s4 + $0xa4] sm:$0xf] %vm1397, %v1314
  %1440 = vst.msk [vmem:[%s4 + $0xa8] sm:$0xf] %vm1397, %v1315
  %1441 = vst.msk [vmem:[%s4 + $0xac] sm:$0xf] %vm1397, %v1316
  %1442 = vst.msk [vmem:[%s4 + $0xb0] sm:$0xf] %vm1397, %v1317
  %1443 = vst.msk [vmem:[%s4 + $0xb4] sm:$0xf] %vm1397, %v1318
  %1444 = vst.msk [vmem:[%s4 + $0xb8] sm:$0xf] %vm1397, %v1319
  %1445 = vst.msk [vmem:[%s4 + $0xbc] sm:$0xf] %vm1397, %v1320
  %1446 = vst.msk [vmem:[%s4 + $0xc0] sm:$0xf] %vm1397, %v1321
  %1447 = vst.msk [vmem:[%s4 + $0xc4] sm:$0xf] %vm1397, %v1322
  %1448 = vst.msk [vmem:[%s4 + $0xc8] sm:$0xf] %vm1397, %v1323
  %1449 = vst.msk [vmem:[%s4 + $0xcc] sm:$0xf] %vm1397, %v1324
  %1450 = vst.msk [vmem:[%s4 + $0xd0] sm:$0xf] %vm1397, %v1325
  %1451 = vst.msk [vmem:[%s4 + $0xd4] sm:$0xf] %vm1397, %v1326
  %1452 = vst.msk [vmem:[%s4 + $0xd8] sm:$0xf] %vm1397, %v1327
  %1453 = vst.msk [vmem:[%s4 + $0xdc] sm:$0xf] %vm1397, %v1328
  %1454 = vst.msk [vmem:[%s4 + $0xe0] sm:$0xf] %vm1397, %v1329
  %1455 = vst.msk [vmem:[%s4 + $0xe4] sm:$0xf] %vm1397, %v1330
  %1456 = vst.msk [vmem:[%s4 + $0xe8] sm:$0xf] %vm1397, %v1331
  %1457 = vst.msk [vmem:[%s4 + $0xec] sm:$0xf] %vm1397, %v1332
  %1458 = vst.msk [vmem:[%s4 + $0xf0] sm:$0xf] %vm1397, %v1333
  %1459 = vst.msk [vmem:[%s4 + $0xf4] sm:$0xf] %vm1397, %v1334
  // Predicated region
  $region18: #{tpu_custom_call.1} parent=0 // pred_check
    _
  $region19: #{tpu_custom_call.1} parent=0 // pred_check_branch
    %1461 = sbr.rel (0) target = $region21
  $region20: #{tpu_custom_call.1} parent=0 // pred_region
    _
  $region21: #{tpu_custom_call.1} parent=0 // pred_fallthru
    _
  // Predicated region
  $region22: #{tpu_custom_call.1} parent=0 // pred_check
    _
  $region23: #{tpu_custom_call.1} parent=0 // pred_check_branch
    %1463 = sbr.rel (0) target = $region25
  $region24: #{tpu_custom_call.1} parent=0 // pred_region
    _
  $region25: #{tpu_custom_call.1} parent=0 // pred_fallthru
    _

</llo_original>
